<compile_context>
chip_gen: v7x
topology: tpu7x:2x2x1
jax: 0.10.0
libtpu: 0.0.40
codegen_flags: <defaults>
</compile_context>

<pallas_src>
import functools

import jax
import jax.numpy as jnp
from jax import lax
from jax.experimental import pallas as pl
from jax.experimental.pallas import tpu as pltpu


def _bigru_t1_kernel(x_ref, w_ref, b_ref, bhn_ref, out_ref, *, hidden_size):
    """Single-timestep bidirectional GRU with zero initial hidden state.

    x_ref   : (H, Bt)    sentences as columns (batch on lanes)
    w_ref   : (6H, H)    fused [fwd r|z|n ; bwd r|z|n] input weights, torch layout
    b_ref   : (6H, 1)    fused bias: b_ih + b_hh for r,z gates, b_ih for n gate
    bhn_ref : (2H, 1)    hidden bias of the n gate per direction (gated by r)
    out_ref : (2H, Bt)   rows [0:H) = forward hidden, rows [H:2H) = backward
    """
    H = hidden_size
    x = x_ref[...]                                              # (H, Bt)

    # One fused MXU matmul for both directions and all three gates:
    # contract W's trailing H axis with x's leading H axis -> (6H, Bt).
    g = lax.dot_general(w_ref[...], x, (((1,), (0,)), ((), ())),
                        preferred_element_type=jnp.float32)     # (6H, Bt)
    g = g + b_ref[...]                                          # lane-broadcast bias

    def direction(d):
        o = 3 * H * d
        r = jax.nn.sigmoid(g[o:o + H, :])
        z = jax.nn.sigmoid(g[o + H:o + 2 * H, :])
        # n = tanh(W_in x + b_in + r * (W_hn h0 + b_hn)) with h0 == 0.
        n = jnp.tanh(g[o + 2 * H:o + 3 * H, :]
                     + r * bhn_ref[d * H:(d + 1) * H, :])
        # h' = (1 - z) * n + z * h0  and  h0 == 0.
        return (1.0 - z) * n

    # Single lane-dense (2H, Bt) slab store (sublane-aligned concat: H % 8 == 0).
    out_ref[...] = jnp.concatenate([direction(0), direction(1)], axis=0)


def fuse_gru_params(params):
    """One-time host-side fusion of torch-layout GRU params (h0 == 0 exploited).

    Drops w_hh_f / w_hh_b entirely; pre-sums the r/z biases.  Call once and
    reuse the result on every forward call (no per-call transposes/concats).
    """
    H = params["w_ih_f"].shape[1]

    def dir_bias(b_ih, b_hh):
        # r, z gates: b_ih + b_hh fold together; n gate keeps only b_ih here
        # (b_hh_n enters the cell after multiplication by r).
        return jnp.concatenate([b_ih[:2 * H] + b_hh[:2 * H], b_ih[2 * H:]])

    w = jnp.concatenate([params["w_ih_f"], params["w_ih_b"]], axis=0)    # (6H, H)
    b = jnp.concatenate([dir_bias(params["b_ih_f"], params["b_hh_f"]),
                         dir_bias(params["b_ih_b"], params["b_hh_b"])])  # (6H,)
    b_hn = jnp.concatenate([params["b_hh_f"][2 * H:],
                            params["b_hh_b"][2 * H:]])                   # (2H,)
    return {
        "w": w.astype(jnp.float32),                    # keep f32 (tiny at H=32)
        "b": b.reshape(6 * H, 1).astype(jnp.float32),
        "b_hn": b_hn.reshape(2 * H, 1).astype(jnp.float32),
    }


def _num_tc_splits(batch):
    """2 grid steps only if the chip has 2 TensorCores (v7x) and B is big enough
    to amortize the extra ~0.35 us step; v5e/v6e (single TC) always use 1."""
    if batch < 256:
        return 1
    try:
        kind = jax.devices()[0].device_kind.lower()
        return 2 if "v7" in kind else 1
    except Exception:
        return 1


def bigru_t1_batched(x, fused, *, num_splits=None):
    """Run the fused bi-GRU step for B sentences at once.

    x: (B, H) float32.  Returns (2, B, H): [0] = forward hidden, [1] = backward.
    """
    B, H = x.shape
    if num_splits is None:
        num_splits = _num_tc_splits(B)

    LANE = 128
    chunk = num_splits * LANE
    B_pad = ((B + chunk - 1) // chunk) * chunk         # lane-dense, split-aligned
    Bt = B_pad // num_splits                           # multiple of 128

    # One-time wrapper-side transpose + lane padding (XLA op, off the hot kernel).
    xt = jnp.pad(x.astype(jnp.float32).T, ((0, 0), (0, B_pad - B)))   # (H, B_pad)

    out_pad = pl.pallas_call(
        functools.partial(_bigru_t1_kernel, hidden_size=H),
        out_shape=jax.ShapeDtypeStruct((2 * H, B_pad), jnp.float32),
        grid=(num_splits,),
        in_specs=[
            pl.BlockSpec((H, Bt), lambda i: (0, i)),          # sentences (lane-tiled)
            pl.BlockSpec((6 * H, H), lambda i: (0, 0)),       # fused weights
            pl.BlockSpec((6 * H, 1), lambda i: (0, 0)),       # fused bias
            pl.BlockSpec((2 * H, 1), lambda i: (0, 0)),       # n-gate hidden bias
        ],
        out_specs=pl.BlockSpec((2 * H, Bt), lambda i: (0, i)),
        compiler_params=pltpu.CompilerParams(
            dimension_semantics=("parallel",)),               # shards on v7x's 2 TCs
    )(xt, fused["w"], fused["b"], fused["b_hn"])

    # (2H, B_pad) -> (2, B, H): drop lane padding, split directions, batch-major.
    out = out_pad[:, :B].reshape(2, H, B)
    return jnp.transpose(out, (0, 2, 1))


def sent_encoder_forward(sentence, h0_unused, fused):
    """Matches sentEncoder.forward: sentence (H,) -> (out (1,1,2H), h_n (2,1,H)).

    h0 is accepted for API parity but ignored, exactly like the PyTorch module
    (self.gru(sentence) is called without it -> zero initial hidden state).
    Single-sentence calls are launch-bound; batch at the model level when possible.
    """
    del h0_unused
    H = sentence.shape[0]
    h_n = bigru_t1_batched(sentence.reshape(1, H), fused)   # (2, 1, H)
    # seq_len == 1: out[0, 0] = concat(h_fwd, h_bwd) -> contiguous reshape.
    out = h_n.reshape(1, 1, 2 * H)
    return out, h_n


# ----------------------------------------------------------------------------
# Pure-JAX reference replicating torch nn.GRU(H, H, bidirectional=True) with
# zero initial hidden state (uses the full W_hh path to prove the h0==0
# simplification in the kernel is exact).
# ----------------------------------------------------------------------------
def _torch_gru_reference(sentence, params):
    H = sentence.shape[0]
    x = sentence.astype(jnp.float32)

    def cell(x, h, w_ih, w_hh, b_ih, b_hh):
        gi = w_ih @ x + b_ih
        gh = w_hh @ h + b_hh
        r = jax.nn.sigmoid(gi[:H] + gh[:H])
        z = jax.nn.sigmoid(gi[H:2 * H] + gh[H:2 * H])
        n = jnp.tanh(gi[2 * H:] + r * gh[2 * H:])
        return (1.0 - z) * n + z * h

    h0 = jnp.zeros((H,), jnp.float32)
    hf = cell(x, h0, params["w_ih_f"], params["w_hh_f"],
              params["b_ih_f"], params["b_hh_f"])
    hb = cell(x, h0, params["w_ih_b"], params["w_hh_b"],
              params["b_ih_b"], params["b_hh_b"])
    out = jnp.concatenate([hf, hb]).reshape(1, 1, 2 * H)
    h_n = jnp.stack([hf, hb]).reshape(2, 1, H)
    return out, h_n


def init_params(key, H):
    # PyTorch nn.GRU init: uniform(-1/sqrt(H), 1/sqrt(H)) for all params.
    k = 1.0 / jnp.sqrt(jnp.float32(H))
    names_shapes = [
        ("w_ih_f", (3 * H, H)), ("w_hh_f", (3 * H, H)),
        ("b_ih_f", (3 * H,)), ("b_hh_f", (3 * H,)),
        ("w_ih_b", (3 * H, H)), ("w_hh_b", (3 * H, H)),
        ("b_ih_b", (3 * H,)), ("b_hh_b", (3 * H,)),
    ]
    keys = jax.random.split(key, len(names_shapes))
    return {name: jax.random.uniform(kk, shape, jnp.float32, -k, k)
            for kk, (name, shape) in zip(keys, names_shapes)}


if __name__ == "__main__":
    H = 32
    key = jax.random.PRNGKey(0)
    k_x, k_p, k_b, k_c = jax.random.split(key, 4)

    params = init_params(k_p, H)
    fused = fuse_gru_params(params)                 # one-time, outside hot path
    fused = {k: jax.block_until_ready(v) for k, v in fused.items()}

    # --- original module semantics: one sentence -----------------------------
    sentence = jax.random.normal(k_x, (H,), jnp.float32)
    h0 = jnp.zeros((2, 1, H), jnp.float32)          # passed but ignored, like torch
    out, h_n = sent_encoder_forward(sentence, h0, fused)
    out = jax.block_until_ready(out)
    h_n = jax.block_until_ready(h_n)

    out_ref, h_n_ref = _torch_gru_reference(sentence, params)
    assert out.shape == (1, 1, 2 * H) and h_n.shape == (2, 1, H)
    assert jnp.allclose(out, out_ref, atol=1e-5, rtol=1e-5)
    assert jnp.allclose(h_n, h_n_ref, atol=1e-5, rtol=1e-5)

    # --- batched variant: amortize the GEMM over many sentences --------------
    B = 16
    sents = jax.random.normal(k_b, (B, H), jnp.float32)
    hn_b = jax.block_until_ready(bigru_t1_batched(sents, fused))
    ref_b = jnp.stack([
        jnp.stack([_torch_gru_reference(sents[i], params)[1][d, 0]
                   for i in range(B)])
        for d in range(2)])
    assert hn_b.shape == (2, B, H)
    assert jnp.allclose(hn_b, ref_b, atol=1e-5, rtol=1e-5)

    # --- odd batch size (exercises lane padding path) ------------------------
    B2 = 3
    sents2 = jax.random.normal(k_c, (B2, H), jnp.float32)
    hn_b2 = jax.block_until_ready(bigru_t1_batched(sents2, fused))
    ref_b2 = jnp.stack([
        jnp.stack([_torch_gru_reference(sents2[i], params)[1][d, 0]
                   for i in range(B2)])
        for d in range(2)])
    assert hn_b2.shape == (2, B2, H)
    assert jnp.allclose(hn_b2, ref_b2, atol=1e-5, rtol=1e-5)

    print("KERNEL_OK")
</pallas_src>

<mosaic_0001>
module attributes {stable_mosaic.version = 11 : i64} {
  func.func @_bigru_t1_kernel(%arg0: i32, %arg1: memref<32x128xf32, #tpu.memory_space<vmem>>, %arg2: memref<192x32xf32, #tpu.memory_space<vmem>>, %arg3: memref<192x1xf32, #tpu.memory_space<vmem>>, %arg4: memref<64x1xf32, #tpu.memory_space<vmem>>, %arg5: memref<64x128xf32, #tpu.memory_space<vmem>>) attributes {dimension_semantics = [#tpu.dimension_semantics<parallel>], iteration_bounds = array<i64: 1>, scalar_prefetch = 0 : i64, scratch_operands = 0 : i64, tpu.core_type = #tpu.core_type<tc>, window_params = [{transform_indices = @transform_0, window_bounds = array<i64: 32, 128>}, {pipeline_mode = #tpu.pipeline_mode<synchronous>, transform_indices = @transform_1, window_bounds = array<i64: 192, 32>}, {pipeline_mode = #tpu.pipeline_mode<synchronous>, transform_indices = @transform_2, window_bounds = array<i64: 192, 1>}, {pipeline_mode = #tpu.pipeline_mode<synchronous>, transform_indices = @transform_3, window_bounds = array<i64: 64, 1>}, {transform_indices = @transform_4, window_bounds = array<i64: 64, 128>}]} {
    %c0 = arith.constant 0 : index
    %c0_0 = arith.constant 0 : index
    %0 = vector.load %arg1[%c0, %c0_0] : memref<32x128xf32, #tpu.memory_space<vmem>>, vector<32x128xf32>
    %c0_1 = arith.constant 0 : index
    %c0_2 = arith.constant 0 : index
    %1 = vector.load %arg2[%c0_1, %c0_2] : memref<192x32xf32, #tpu.memory_space<vmem>>, vector<192x32xf32>
    %cst = arith.constant dense<0.000000e+00> : vector<192x128xf32>
    %2 = tpu.matmul %1, %0, %cst {dimension_numbers = #tpu.dot_dimension_numbers<[1], [0], [0], [1], [0, 0, 1, 1], [], []>} : vector<192x32xf32>, vector<32x128xf32>, vector<192x128xf32> -> vector<192x128xf32>
    %c0_3 = arith.constant 0 : index
    %c0_4 = arith.constant 0 : index
    %3 = vector.load %arg3[%c0_3, %c0_4] : memref<192x1xf32, #tpu.memory_space<vmem>>, vector<192x1xf32>
    %4 = vector.broadcast %3 : vector<192x1xf32> to vector<192x128xf32>
    %5 = arith.addf %2, %4 : vector<192x128xf32>
    %6 = vector.extract_strided_slice %5 {offsets = [0, 0], sizes = [32, 128], strides = [1, 1]} : vector<192x128xf32> to vector<32x128xf32>
    %7 = arith.negf %6 : vector<32x128xf32>
    %8 = math.exp %7 : vector<32x128xf32>
    %cst_5 = arith.constant 1.000000e+00 : f32
    %9 = vector.broadcast %cst_5 : f32 to vector<32x128xf32>
    %10 = arith.addf %9, %8 : vector<32x128xf32>
    %11 = arith.divf %9, %10 : vector<32x128xf32>
    %12 = vector.extract_strided_slice %5 {offsets = [32, 0], sizes = [32, 128], strides = [1, 1]} : vector<192x128xf32> to vector<32x128xf32>
    %13 = arith.negf %12 : vector<32x128xf32>
    %14 = math.exp %13 : vector<32x128xf32>
    %cst_6 = arith.constant 1.000000e+00 : f32
    %15 = vector.broadcast %cst_6 : f32 to vector<32x128xf32>
    %16 = arith.addf %15, %14 : vector<32x128xf32>
    %17 = arith.divf %15, %16 : vector<32x128xf32>
    %18 = vector.extract_strided_slice %5 {offsets = [64, 0], sizes = [32, 128], strides = [1, 1]} : vector<192x128xf32> to vector<32x128xf32>
    %c0_7 = arith.constant 0 : index
    %c0_8 = arith.constant 0 : index
    %19 = vector.load %arg4[%c0_7, %c0_8] : memref<64x1xf32, #tpu.memory_space<vmem>>, vector<32x1xf32>
    %20 = vector.broadcast %19 : vector<32x1xf32> to vector<32x128xf32>
    %21 = arith.mulf %11, %20 : vector<32x128xf32>
    %22 = arith.addf %18, %21 : vector<32x128xf32>
    %23 = math.tanh %22 : vector<32x128xf32>
    %cst_9 = arith.constant 1.000000e+00 : f32
    %24 = vector.broadcast %cst_9 : f32 to vector<32x128xf32>
    %25 = arith.subf %24, %17 : vector<32x128xf32>
    %26 = arith.mulf %25, %23 : vector<32x128xf32>
    %27 = vector.extract_strided_slice %5 {offsets = [96, 0], sizes = [32, 128], strides = [1, 1]} : vector<192x128xf32> to vector<32x128xf32>
    %28 = arith.negf %27 : vector<32x128xf32>
    %29 = math.exp %28 : vector<32x128xf32>
    %cst_10 = arith.constant 1.000000e+00 : f32
    %30 = vector.broadcast %cst_10 : f32 to vector<32x128xf32>
    %31 = arith.addf %30, %29 : vector<32x128xf32>
    %32 = arith.divf %30, %31 : vector<32x128xf32>
    %33 = vector.extract_strided_slice %5 {offsets = [128, 0], sizes = [32, 128], strides = [1, 1]} : vector<192x128xf32> to vector<32x128xf32>
    %34 = arith.negf %33 : vector<32x128xf32>
    %35 = math.exp %34 : vector<32x128xf32>
    %cst_11 = arith.constant 1.000000e+00 : f32
    %36 = vector.broadcast %cst_11 : f32 to vector<32x128xf32>
    %37 = arith.addf %36, %35 : vector<32x128xf32>
    %38 = arith.divf %36, %37 : vector<32x128xf32>
    %39 = vector.extract_strided_slice %5 {offsets = [160, 0], sizes = [32, 128], strides = [1, 1]} : vector<192x128xf32> to vector<32x128xf32>
    %c32 = arith.constant 32 : index
    %c0_12 = arith.constant 0 : index
    %40 = vector.load %arg4[%c32, %c0_12] : memref<64x1xf32, #tpu.memory_space<vmem>>, vector<32x1xf32>
    %41 = vector.broadcast %40 : vector<32x1xf32> to vector<32x128xf32>
    %42 = arith.mulf %32, %41 : vector<32x128xf32>
    %43 = arith.addf %39, %42 : vector<32x128xf32>
    %44 = math.tanh %43 : vector<32x128xf32>
    %cst_13 = arith.constant 1.000000e+00 : f32
    %45 = vector.broadcast %cst_13 : f32 to vector<32x128xf32>
    %46 = arith.subf %45, %38 : vector<32x128xf32>
    %47 = arith.mulf %46, %44 : vector<32x128xf32>
    %48 = tpu.concatenate %26, %47 in 0 : vector<32x128xf32>, vector<32x128xf32> -> vector<64x128xf32>
    %c0_14 = arith.constant 0 : index
    %c0_15 = arith.constant 0 : index
    %49 = vector.load %arg5[%c0_14, %c0_15] : memref<64x128xf32, #tpu.memory_space<vmem>>, vector<64x128xf32>
    tpu.vector_store %arg5[%c0_14, %c0_15], %48 {strides = array<i32>} : memref<64x128xf32, #tpu.memory_space<vmem>>, vector<64x128xf32>,
    return
  }
  func.func @transform_0(%arg0: i32) -> (i32, i32) {
    %c0_i32 = arith.constant 0 : i32
    %c0_i32_0 = arith.constant 0 : i32
    return %c0_i32, %arg0 : i32, i32
  }
  func.func @transform_1(%arg0: i32) -> (i32, i32) {
    %c0_i32 = arith.constant 0 : i32
    %c0_i32_0 = arith.constant 0 : i32
    %c0_i32_1 = arith.constant 0 : i32
    return %c0_i32, %c0_i32_0 : i32, i32
  }
  func.func @transform_2(%arg0: i32) -> (i32, i32) {
    %c0_i32 = arith.constant 0 : i32
    %c0_i32_0 = arith.constant 0 : i32
    %c0_i32_1 = arith.constant 0 : i32
    return %c0_i32, %c0_i32_0 : i32, i32
  }
  func.func @transform_3(%arg0: i32) -> (i32, i32) {
    %c0_i32 = arith.constant 0 : i32
    %c0_i32_0 = arith.constant 0 : i32
    %c0_i32_1 = arith.constant 0 : i32
    return %c0_i32, %c0_i32_0 : i32, i32
  }
  func.func @transform_4(%arg0: i32) -> (i32, i32) {
    %c0_i32 = arith.constant 0 : i32
    %c0_i32_0 = arith.constant 0 : i32
    return %c0_i32, %arg0 : i32, i32
  }
}

</mosaic_0001>

<llo_original>
// kernel: tpu_custom_call.1
$region0: #{tpu_custom_call.1}
  #allocation0 [shape = 'u32[]', space=smem, size = 0x4, offset = 0x4, fixed_abs, tag = 'smem constant byte address 0x4 - core index']
  #allocation1 [shape = 'u32[144,128]{1,0:T(1,128)}', space=vmem, size = 0x12000, scoped, tag = 'internal scratch']
  %s0 = inlined_call_operand.vmem [shape: f32[32,128], index: 0, kind: input, shape index: {}]
  %s1 = inlined_call_operand.vmem [shape: f32[192,32], index: 1, kind: input, shape index: {}]
  %s2 = inlined_call_operand.vmem [shape: f32[192,1], index: 2, kind: input, shape index: {}]
  %s3 = inlined_call_operand.vmem [shape: f32[64,1], index: 3, kind: input, shape index: {}]
  %s4 = inlined_call_operand.hbm [shape: f32[64,128], index: 4, kind: output, shape index: {}]
  %s5 = sld [smem:[#allocation0]]
  $region26: #{tpu_custom_call.1} parent=0
    _
  %s7 = ssub.s32 1, %s5
  %s8 = scalar_select 0, %s7, %s5
  $region1: #{tpu_custom_call.1} parent=0
    #allocation2 [shape = 'u8[32768]{0}', space=vmem, size = 0x8000, scoped, tag = 'output window, operand 0, single buffered']
    #allocation3 [shape = 's32[1]{0}', space=sflag, size = 0x4, scoped, tag = 'scoped memory for tpu_custom_call.1']
    %9 = vsyncpa [#allocation3], 0
    // Predicated region
    $region2: #{tpu_custom_call.1} parent=1 // pred_check
      _
    $region3: #{tpu_custom_call.1} parent=1 // pred_check_branch
      %11 = sbr.rel (0) target = $region5
    $region4: #{tpu_custom_call.1} parent=1 // pred_region
      _
    $region5: #{tpu_custom_call.1} parent=1 // pred_fallthru
      _
    // Predicated region
    $region6: #{tpu_custom_call.1} parent=1 // pred_check
      _
    $region7: #{tpu_custom_call.1} parent=1 // pred_check_branch
      %13 = sbr.rel (0) target = $region9
    $region8: #{tpu_custom_call.1} parent=1 // pred_region
      _
    $region9: #{tpu_custom_call.1} parent=1 // pred_fallthru
      _
    // Predicated region
    $region10: #{tpu_custom_call.1} parent=1 // pred_check
      _
    $region11: #{tpu_custom_call.1} parent=1 // pred_check_branch
      %15 = sbr.rel (0) target = $region13
    $region12: #{tpu_custom_call.1} parent=1 // pred_region
      _
    $region13: #{tpu_custom_call.1} parent=1 // pred_fallthru
      _
    // Predicated region
    $region14: #{tpu_custom_call.1} parent=1 // pred_check
      _
    $region15: #{tpu_custom_call.1} parent=1 // pred_check_branch
      %17 = sbr.rel (0) target = $region17
    $region16: #{tpu_custom_call.1} parent=1 // pred_region
      _
    $region17: #{tpu_custom_call.1} parent=1 // pred_fallthru
      _
    %v18 = vld [vmem:[%s0] sm:$0xff]
    %v19 = vld [vmem:[%s0 + $0x8] sm:$0xff]
    %v20 = vld [vmem:[%s0 + $0x10] sm:$0xff]
    %v21 = vld [vmem:[%s0 + $0x18] sm:$0xff]
    %v22 = vld [vmem:[%s1] sm:$0xff]
    %v23 = vld [vmem:[%s1 + $0x8] sm:$0xff]
    %v24 = vld [vmem:[%s1 + $0x10] sm:$0xff]
    %v25 = vld [vmem:[%s1 + $0x18] sm:$0xff]
    %v26 = vld [vmem:[%s1 + $0x20] sm:$0xff]
    %v27 = vld [vmem:[%s1 + $0x28] sm:$0xff]
    %v28 = vld [vmem:[%s1 + $0x30] sm:$0xff]
    %v29 = vld [vmem:[%s1 + $0x38] sm:$0xff]
    %v30 = vld [vmem:[%s1 + $0x40] sm:$0xff]
    %v31 = vld [vmem:[%s1 + $0x48] sm:$0xff]
    %v32 = vld [vmem:[%s1 + $0x50] sm:$0xff]
    %v33 = vld [vmem:[%s1 + $0x58] sm:$0xff]
    %v34 = vld [vmem:[%s1 + $0x60] sm:$0xff]
    %v35 = vld [vmem:[%s1 + $0x68] sm:$0xff]
    %v36 = vld [vmem:[%s1 + $0x70] sm:$0xff]
    %v37 = vld [vmem:[%s1 + $0x78] sm:$0xff]
    %v38 = vld [vmem:[%s1 + $0x80] sm:$0xff]
    %v39 = vld [vmem:[%s1 + $0x88] sm:$0xff]
    %v40 = vld [vmem:[%s1 + $0x90] sm:$0xff]
    %v41 = vld [vmem:[%s1 + $0x98] sm:$0xff]
    %v42 = vld [vmem:[%s1 + $0xa0] sm:$0xff]
    %v43 = vld [vmem:[%s1 + $0xa8] sm:$0xff]
    %v44 = vld [vmem:[%s1 + $0xb0] sm:$0xff]
    %v45 = vld [vmem:[%s1 + $0xb8] sm:$0xff]
    %v46 = vld [vmem:[%s2] sm:$0xff]
    %v47 = vld [vmem:[%s2 + $0x8] sm:$0xff]
    %v48 = vld [vmem:[%s2 + $0x10] sm:$0xff]
    %v49 = vld [vmem:[%s2 + $0x18] sm:$0xff]
    %v50 = vld [vmem:[%s2 + $0x20] sm:$0xff]
    %v51 = vld [vmem:[%s2 + $0x28] sm:$0xff]
    %v52 = vld [vmem:[%s2 + $0x30] sm:$0xff]
    %v53 = vld [vmem:[%s2 + $0x38] sm:$0xff]
    %v54 = vld [vmem:[%s2 + $0x40] sm:$0xff]
    %v55 = vld [vmem:[%s2 + $0x48] sm:$0xff]
    %v56 = vld [vmem:[%s2 + $0x50] sm:$0xff]
    %v57 = vld [vmem:[%s2 + $0x58] sm:$0xff]
    %v58 = vld [vmem:[%s2 + $0x60] sm:$0xff]
    %v59 = vld [vmem:[%s2 + $0x68] sm:$0xff]
    %v60 = vld [vmem:[%s2 + $0x70] sm:$0xff]
    %v61 = vld [vmem:[%s2 + $0x78] sm:$0xff]
    %v62 = vld [vmem:[%s2 + $0x80] sm:$0xff]
    %v63 = vld [vmem:[%s2 + $0x88] sm:$0xff]
    %v64 = vld [vmem:[%s2 + $0x90] sm:$0xff]
    %v65 = vld [vmem:[%s2 + $0x98] sm:$0xff]
    %v66 = vld [vmem:[%s2 + $0xa0] sm:$0xff]
    %v67 = vld [vmem:[%s2 + $0xa8] sm:$0xff]
    %v68 = vld [vmem:[%s2 + $0xb0] sm:$0xff]
    %v69 = vld [vmem:[%s2 + $0xb8] sm:$0xff]
    %71 = vset.pattern.permute.xlu0 0
    %72 = vperm.xlu0 %71, %v46
    %v73 = vpop.permute.xlu0 %72
    %76 = vset.pattern.permute.xlu0 0
    %77 = vperm.xlu0 %76, %v47
    %v78 = vpop.permute.xlu0 %77
    %81 = vset.pattern.permute.xlu0 0
    %82 = vperm.xlu0 %81, %v48
    %v83 = vpop.permute.xlu0 %82
    %86 = vset.pattern.permute.xlu0 0
    %87 = vperm.xlu0 %86, %v49
    %v88 = vpop.permute.xlu0 %87
    %91 = vset.pattern.permute.xlu0 0
    %92 = vperm.xlu0 %91, %v50
    %v93 = vpop.permute.xlu0 %92
    %96 = vset.pattern.permute.xlu0 0
    %97 = vperm.xlu0 %96, %v51
    %v98 = vpop.permute.xlu0 %97
    %101 = vset.pattern.permute.xlu0 0
    %102 = vperm.xlu0 %101, %v52
    %v103 = vpop.permute.xlu0 %102
    %106 = vset.pattern.permute.xlu0 0
    %107 = vperm.xlu0 %106, %v53
    %v108 = vpop.permute.xlu0 %107
    %111 = vset.pattern.permute.xlu0 0
    %112 = vperm.xlu0 %111, %v54
    %v113 = vpop.permute.xlu0 %112
    %116 = vset.pattern.permute.xlu0 0
    %117 = vperm.xlu0 %116, %v55
    %v118 = vpop.permute.xlu0 %117
    %121 = vset.pattern.permute.xlu0 0
    %122 = vperm.xlu0 %121, %v56
    %v123 = vpop.permute.xlu0 %122
    %126 = vset.pattern.permute.xlu0 0
    %127 = vperm.xlu0 %126, %v57
    %v128 = vpop.permute.xlu0 %127
    %131 = vset.pattern.permute.xlu0 0
    %132 = vperm.xlu0 %131, %v58
    %v133 = vpop.permute.xlu0 %132
    %136 = vset.pattern.permute.xlu0 0
    %137 = vperm.xlu0 %136, %v59
    %v138 = vpop.permute.xlu0 %137
    %141 = vset.pattern.permute.xlu0 0
    %142 = vperm.xlu0 %141, %v60
    %v143 = vpop.permute.xlu0 %142
    %146 = vset.pattern.permute.xlu0 0
    %147 = vperm.xlu0 %146, %v61
    %v148 = vpop.permute.xlu0 %147
    %151 = vset.pattern.permute.xlu0 0
    %152 = vperm.xlu0 %151, %v62
    %v153 = vpop.permute.xlu0 %152
    %156 = vset.pattern.permute.xlu0 0
    %157 = vperm.xlu0 %156, %v63
    %v158 = vpop.permute.xlu0 %157
    %161 = vset.pattern.permute.xlu0 0
    %162 = vperm.xlu0 %161, %v64
    %v163 = vpop.permute.xlu0 %162
    %166 = vset.pattern.permute.xlu0 0
    %167 = vperm.xlu0 %166, %v65
    %v168 = vpop.permute.xlu0 %167
    %171 = vset.pattern.permute.xlu0 0
    %172 = vperm.xlu0 %171, %v66
    %v173 = vpop.permute.xlu0 %172
    %176 = vset.pattern.permute.xlu0 0
    %177 = vperm.xlu0 %176, %v67
    %v178 = vpop.permute.xlu0 %177
    %181 = vset.pattern.permute.xlu0 0
    %182 = vperm.xlu0 %181, %v68
    %v183 = vpop.permute.xlu0 %182
    %186 = vset.pattern.permute.xlu0 0
    %187 = vperm.xlu0 %186, %v69
    %v188 = vpop.permute.xlu0 %187
    %vm190 = vcmask 261120
    %v192 = vsel %vm190, %v22, 0
    %v195 = vsel %vm190, %v23, 0
    %v198 = vsel %vm190, %v24, 0
    %v201 = vsel %vm190, %v25, 0
    %v204 = vsel %vm190, %v26, 0
    %v207 = vsel %vm190, %v27, 0
    %v210 = vsel %vm190, %v28, 0
    %v213 = vsel %vm190, %v29, 0
    %v216 = vsel %vm190, %v30, 0
    %v219 = vsel %vm190, %v31, 0
    %v222 = vsel %vm190, %v32, 0
    %v225 = vsel %vm190, %v33, 0
    %v228 = vsel %vm190, %v34, 0
    %v231 = vsel %vm190, %v35, 0
    %v234 = vsel %vm190, %v36, 0
    %v237 = vsel %vm190, %v37, 0
    %v240 = vsel %vm190, %v38, 0
    %v243 = vsel %vm190, %v39, 0
    %v246 = vsel %vm190, %v40, 0
    %v249 = vsel %vm190, %v41, 0
    %v252 = vsel %vm190, %v42, 0
    %v255 = vsel %vm190, %v43, 0
    %v258 = vsel %vm190, %v44, 0
    %v261 = vsel %vm190, %v45, 0
    %263 = vmatprep.subr.mxu0 0.0
    %264 = vmatpush1.msra.mxu0 %v18
    %265 = vmatprep.subr.mxu0 0.0
    %266 = vmatpush1.msra.mxu0 %v19
    %267 = vmatprep.subr.mxu0 0.0
    %268 = vmatpush1.msra.mxu0 %v20
    %269 = vmatprep.subr.mxu0 0.0
    %270 = vmatpush1.msra.mxu0 %v21
    %271 = vmatprep.subr.mxu0 0.0
    %272 = vmatpush1.msra.mxu0 0.0
    %273 = vmatprep.subr.mxu0 0.0
    %274 = vmatpush1.msra.mxu0 0.0
    %275 = vmatprep.subr.mxu0 0.0
    %276 = vmatpush1.msra.mxu0 0.0
    %277 = vmatprep.subr.mxu0 0.0
    %278 = vmatpush1.msra.mxu0 0.0
    %279 = vmatprep.subr.mxu0 0.0
    %280 = vmatpush1.msra.mxu0 0.0
    %281 = vmatprep.subr.mxu0 0.0
    %282 = vmatpush1.msra.mxu0 0.0
    %283 = vmatprep.subr.mxu0 0.0
    %284 = vmatpush1.msra.mxu0 0.0
    %285 = vmatprep.subr.mxu0 0.0
    %286 = vmatpush1.msra.mxu0 0.0
    %287 = vmatprep.subr.mxu0 0.0
    %288 = vmatpush1.msra.mxu0 0.0
    %289 = vmatprep.subr.mxu0 0.0
    %290 = vmatpush1.msra.mxu0 0.0
    %291 = vmatprep.subr.mxu0 0.0
    %292 = vmatpush1.msra.mxu0 0.0
    %293 = vmatprep.subr.mxu0 0.0
    %294 = vmatpush1.msra.mxu0 0.0
    %295 = vmatprep.subr.mxu0 0.0
    %296 = vmatpush1.msra.mxu0 0.0
    %297 = vmatprep.subr.mxu0 0.0
    %298 = vmatpush1.msra.mxu0 0.0
    %299 = vmatprep.subr.mxu0 0.0
    %300 = vmatpush1.msra.mxu0 0.0
    %301 = vmatprep.subr.mxu0 0.0
    %302 = vmatpush1.msra.mxu0 0.0
    %303 = vmatprep.subr.mxu0 0.0
    %304 = vmatpush1.msra.mxu0 0.0
    %305 = vmatprep.subr.mxu0 0.0
    %306 = vmatpush1.msra.mxu0 0.0
    %307 = vmatprep.subr.mxu0 0.0
    %308 = vmatpush1.msra.mxu0 0.0
    %309 = vmatprep.subr.mxu0 0.0
    %310 = vmatpush1.msra.mxu0 0.0
    %311 = vmatprep.subr.mxu0 0.0
    %312 = vmatpush1.msra.mxu0 0.0
    %313 = vmatprep.subr.mxu0 0.0
    %314 = vmatpush1.msra.mxu0 0.0
    %315 = vmatprep.subr.mxu0 0.0
    %316 = vmatpush1.msra.mxu0 0.0
    %317 = vmatprep.subr.mxu0 0.0
    %318 = vmatpush1.msra.mxu0 0.0
    %319 = vmatprep.subr.mxu0 0.0
    %320 = vmatpush1.msra.mxu0 0.0
    %321 = vmatprep.subr.mxu0 0.0
    %322 = vmatpush1.msra.mxu0 0.0
    %323 = vmatprep.subr.mxu0 0.0
    %324 = vmatpush1.msra.mxu0 0.0
    %325 = vmatprep.subr.mxu0 0.0
    %326 = vmatpush1.msra.mxu0 0.0
    %327 = vmatprep.mubr.f32.mxu0 0.0
    %328 = vmatmul.mubr.f32.gmra.mrb[0].mxu0 %v192
    %v329 = vpop.f32.mrb[0].mxu0
    %v330 = vadd.f32 %v73, %v329
    %v331 = vpop.f32.mrb[0].mxu0
    %332 = vmatprep.mubr.f32.mxu0 0.0
    %333 = vmatmul.mubr.f32.gmra.mrb[0].mxu0 %v195
    %v334 = vpop.f32.mrb[0].mxu0
    %v335 = vadd.f32 %v78, %v334
    %v336 = vpop.f32.mrb[0].mxu0
    %337 = vmatprep.mubr.f32.mxu0 0.0
    %338 = vmatmul.mubr.f32.gmra.mrb[0].mxu0 %v198
    %v339 = vpop.f32.mrb[0].mxu0
    %v340 = vadd.f32 %v83, %v339
    %v341 = vpop.f32.mrb[0].mxu0
    %342 = vmatprep.mubr.f32.mxu0 0.0
    %343 = vmatmul.mubr.f32.gmra.mrb[0].mxu0 %v201
    %v344 = vpop.f32.mrb[0].mxu0
    %v345 = vadd.f32 %v88, %v344
    %v346 = vpop.f32.mrb[0].mxu0
    %347 = vmatprep.mubr.f32.mxu0 0.0
    %348 = vmatmul.mubr.f32.gmra.mrb[0].mxu0 %v204
    %v349 = vpop.f32.mrb[0].mxu0
    %v350 = vadd.f32 %v93, %v349
    %v351 = vpop.f32.mrb[0].mxu0
    %352 = vmatprep.mubr.f32.mxu0 0.0
    %353 = vmatmul.mubr.f32.gmra.mrb[0].mxu0 %v207
    %v354 = vpop.f32.mrb[0].mxu0
    %v355 = vadd.f32 %v98, %v354
    %v356 = vpop.f32.mrb[0].mxu0
    %357 = vmatprep.mubr.f32.mxu0 0.0
    %358 = vmatmul.mubr.f32.gmra.mrb[0].mxu0 %v210
    %v359 = vpop.f32.mrb[0].mxu0
    %v360 = vadd.f32 %v103, %v359
    %v361 = vpop.f32.mrb[0].mxu0
    %362 = vmatprep.mubr.f32.mxu0 0.0
    %363 = vmatmul.mubr.f32.gmra.mrb[0].mxu0 %v213
    %v364 = vpop.f32.mrb[0].mxu0
    %v365 = vadd.f32 %v108, %v364
    %v366 = vpop.f32.mrb[0].mxu0
    %367 = vmatprep.mubr.f32.mxu0 0.0
    %368 = vmatmul.mubr.f32.gmra.mrb[0].mxu0 %v216
    %v369 = vpop.f32.mrb[0].mxu0
    %v370 = vadd.f32 %v113, %v369
    %v371 = vpop.f32.mrb[0].mxu0
    %372 = vmatprep.mubr.f32.mxu0 0.0
    %373 = vmatmul.mubr.f32.gmra.mrb[0].mxu0 %v219
    %v374 = vpop.f32.mrb[0].mxu0
    %v375 = vadd.f32 %v118, %v374
    %v376 = vpop.f32.mrb[0].mxu0
    %377 = vmatprep.mubr.f32.mxu0 0.0
    %378 = vmatmul.mubr.f32.gmra.mrb[0].mxu0 %v222
    %v379 = vpop.f32.mrb[0].mxu0
    %v380 = vadd.f32 %v123, %v379
    %v381 = vpop.f32.mrb[0].mxu0
    %382 = vmatprep.mubr.f32.mxu0 0.0
    %383 = vmatmul.mubr.f32.gmra.mrb[0].mxu0 %v225
    %v384 = vpop.f32.mrb[0].mxu0
    %v385 = vadd.f32 %v128, %v384
    %v386 = vpop.f32.mrb[0].mxu0
    %387 = vmatprep.mubr.f32.mxu0 0.0
    %388 = vmatmul.mubr.f32.gmra.mrb[0].mxu0 %v228
    %v389 = vpop.f32.mrb[0].mxu0
    %v390 = vadd.f32 %v133, %v389
    %v391 = vpop.f32.mrb[0].mxu0
    %392 = vmatprep.mubr.f32.mxu0 0.0
    %393 = vmatmul.mubr.f32.gmra.mrb[0].mxu0 %v231
    %v394 = vpop.f32.mrb[0].mxu0
    %v395 = vadd.f32 %v138, %v394
    %v396 = vpop.f32.mrb[0].mxu0
    %397 = vmatprep.mubr.f32.mxu0 0.0
    %398 = vmatmul.mubr.f32.gmra.mrb[0].mxu0 %v234
    %v399 = vpop.f32.mrb[0].mxu0
    %v400 = vadd.f32 %v143, %v399
    %v401 = vpop.f32.mrb[0].mxu0
    %402 = vmatprep.mubr.f32.mxu0 0.0
    %403 = vmatmul.mubr.f32.gmra.mrb[0].mxu0 %v237
    %v404 = vpop.f32.mrb[0].mxu0
    %v405 = vadd.f32 %v148, %v404
    %v406 = vpop.f32.mrb[0].mxu0
    %407 = vmatprep.mubr.f32.mxu0 0.0
    %408 = vmatmul.mubr.f32.gmra.mrb[0].mxu0 %v240
    %v409 = vpop.f32.mrb[0].mxu0
    %v410 = vadd.f32 %v153, %v409
    %v411 = vpop.f32.mrb[0].mxu0
    %412 = vmatprep.mubr.f32.mxu0 0.0
    %413 = vmatmul.mubr.f32.gmra.mrb[0].mxu0 %v243
    %v414 = vpop.f32.mrb[0].mxu0
    %v415 = vadd.f32 %v158, %v414
    %v416 = vpop.f32.mrb[0].mxu0
    %417 = vmatprep.mubr.f32.mxu0 0.0
    %418 = vmatmul.mubr.f32.gmra.mrb[0].mxu0 %v246
    %v419 = vpop.f32.mrb[0].mxu0
    %v420 = vadd.f32 %v163, %v419
    %v421 = vpop.f32.mrb[0].mxu0
    %422 = vmatprep.mubr.f32.mxu0 0.0
    %423 = vmatmul.mubr.f32.gmra.mrb[0].mxu0 %v249
    %v424 = vpop.f32.mrb[0].mxu0
    %v425 = vadd.f32 %v168, %v424
    %v426 = vpop.f32.mrb[0].mxu0
    %427 = vmatprep.mubr.f32.mxu0 0.0
    %428 = vmatmul.mubr.f32.gmra.mrb[0].mxu0 %v252
    %v429 = vpop.f32.mrb[0].mxu0
    %v430 = vadd.f32 %v173, %v429
    %v431 = vpop.f32.mrb[0].mxu0
    %432 = vmatprep.mubr.f32.mxu0 0.0
    %433 = vmatmul.mubr.f32.gmra.mrb[0].mxu0 %v255
    %v434 = vpop.f32.mrb[0].mxu0
    %v435 = vadd.f32 %v178, %v434
    %v436 = vpop.f32.mrb[0].mxu0
    %437 = vmatprep.mubr.f32.mxu0 0.0
    %438 = vmatmul.mubr.f32.gmra.mrb[0].mxu0 %v258
    %v439 = vpop.f32.mrb[0].mxu0
    %v440 = vadd.f32 %v183, %v439
    %v441 = vpop.f32.mrb[0].mxu0
    %442 = vmatprep.mubr.f32.mxu0 0.0
    %443 = vmatmul.mubr.f32.gmra.mrb[0].mxu0 %v261
    %v444 = vpop.f32.mrb[0].mxu0
    %v445 = vadd.f32 %v188, %v444
    %v446 = vpop.f32.mrb[0].mxu0
    %447 = vdwg.mxu0
    %v448 = vxor.u32 %v330, 2147483648
    %v449 = vxor.u32 %v335, 2147483648
    %v450 = vxor.u32 %v340, 2147483648
    %v451 = vxor.u32 %v345, 2147483648
    %v452 = vmul.f32 %v448, 1.442695
    %v453 = vpow.pop %v452
    %v454 = vmul.f32 %v449, 1.442695
    %v455 = vpow.pop %v454
    %v456 = vmul.f32 %v450, 1.442695
    %v457 = vpow.pop %v456
    %v458 = vmul.f32 %v451, 1.442695
    %v459 = vpow.pop %v458
    %v460 = vadd.f32 %v453, 1.0
    %v461 = vadd.f32 %v455, 1.0
    %v462 = vadd.f32 %v457, 1.0
    %v463 = vadd.f32 %v459, 1.0
    %v464 = vrcp.pop %v460
    %v465 = vmul.f32 1.0, %v464
    %v466 = vrcp.pop %v461
    %v467 = vmul.f32 1.0, %v466
    %v468 = vrcp.pop %v462
    %v469 = vmul.f32 1.0, %v468
    %v470 = vrcp.pop %v463
    %v471 = vmul.f32 1.0, %v470
    %v472 = vxor.u32 %v350, 2147483648
    %v473 = vxor.u32 %v355, 2147483648
    %v474 = vxor.u32 %v360, 2147483648
    %v475 = vxor.u32 %v365, 2147483648
    %v476 = vmul.f32 %v472, 1.442695
    %v477 = vpow.pop %v476
    %v478 = vmul.f32 %v473, 1.442695
    %v479 = vpow.pop %v478
    %v480 = vmul.f32 %v474, 1.442695
    %v481 = vpow.pop %v480
    %v482 = vmul.f32 %v475, 1.442695
    %v483 = vpow.pop %v482
    %v484 = vadd.f32 %v477, 1.0
    %v485 = vadd.f32 %v479, 1.0
    %v486 = vadd.f32 %v481, 1.0
    %v487 = vadd.f32 %v483, 1.0
    %v488 = vrcp.pop %v484
    %v489 = vmul.f32 1.0, %v488
    %v490 = vrcp.pop %v485
    %v491 = vmul.f32 1.0, %v490
    %v492 = vrcp.pop %v486
    %v493 = vmul.f32 1.0, %v492
    %v494 = vrcp.pop %v487
    %v495 = vmul.f32 1.0, %v494
    %v496 = vld [vmem:[%s3] sm:$0xff]
    %v497 = vld [vmem:[%s3 + $0x8] sm:$0xff]
    %v498 = vld [vmem:[%s3 + $0x10] sm:$0xff]
    %v499 = vld [vmem:[%s3 + $0x18] sm:$0xff]
    %501 = vset.pattern.permute.xlu0 0
    %502 = vperm.xlu0 %501, %v496
    %v503 = vpop.permute.xlu0 %502
    %506 = vset.pattern.permute.xlu0 0
    %507 = vperm.xlu0 %506, %v497
    %v508 = vpop.permute.xlu0 %507
    %511 = vset.pattern.permute.xlu0 0
    %512 = vperm.xlu0 %511, %v498
    %v513 = vpop.permute.xlu0 %512
    %516 = vset.pattern.permute.xlu0 0
    %517 = vperm.xlu0 %516, %v499
    %v518 = vpop.permute.xlu0 %517
    %v520 = vmul.f32 %v465, %v503
    %v521 = vmul.f32 %v467, %v508
    %v522 = vmul.f32 %v469, %v513
    %v523 = vmul.f32 %v471, %v518
    %v524 = vadd.f32 %v370, %v520
    %v525 = vadd.f32 %v375, %v521
    %v526 = vadd.f32 %v380, %v522
    %v527 = vadd.f32 %v385, %v523
    %v528 = vtanh.pop %v524
    %v529 = vtanh.pop %v525
    %v530 = vtanh.pop %v526
    %v531 = vtanh.pop %v527
    %v532 = vsub.f32 1.0, %v489
    %v533 = vsub.f32 1.0, %v491
    %v534 = vsub.f32 1.0, %v493
    %v535 = vsub.f32 1.0, %v495
    %v536 = vmul.f32 %v532, %v528
    %v537 = vmul.f32 %v533, %v529
    %v538 = vmul.f32 %v534, %v530
    %v539 = vmul.f32 %v535, %v531
    %v540 = vxor.u32 %v390, 2147483648
    %v541 = vxor.u32 %v395, 2147483648
    %v542 = vxor.u32 %v400, 2147483648
    %v543 = vxor.u32 %v405, 2147483648
    %v544 = vmul.f32 %v540, 1.442695
    %v545 = vpow.pop %v544
    %v546 = vmul.f32 %v541, 1.442695
    %v547 = vpow.pop %v546
    %v548 = vmul.f32 %v542, 1.442695
    %v549 = vpow.pop %v548
    %v550 = vmul.f32 %v543, 1.442695
    %v551 = vpow.pop %v550
    %v552 = vadd.f32 %v545, 1.0
    %v553 = vadd.f32 %v547, 1.0
    %v554 = vadd.f32 %v549, 1.0
    %v555 = vadd.f32 %v551, 1.0
    %v556 = vrcp.pop %v552
    %v557 = vmul.f32 1.0, %v556
    %v558 = vrcp.pop %v553
    %v559 = vmul.f32 1.0, %v558
    %v560 = vrcp.pop %v554
    %v561 = vmul.f32 1.0, %v560
    %v562 = vrcp.pop %v555
    %v563 = vmul.f32 1.0, %v562
    %v564 = vxor.u32 %v410, 2147483648
    %v565 = vxor.u32 %v415, 2147483648
    %v566 = vxor.u32 %v420, 2147483648
    %v567 = vxor.u32 %v425, 2147483648
    %v568 = vmul.f32 %v564, 1.442695
    %v569 = vpow.pop %v568
    %v570 = vmul.f32 %v565, 1.442695
    %v571 = vpow.pop %v570
    %v572 = vmul.f32 %v566, 1.442695
    %v573 = vpow.pop %v572
    %v574 = vmul.f32 %v567, 1.442695
    %v575 = vpow.pop %v574
    %v576 = vadd.f32 %v569, 1.0
    %v577 = vadd.f32 %v571, 1.0
    %v578 = vadd.f32 %v573, 1.0
    %v579 = vadd.f32 %v575, 1.0
    %v580 = vrcp.pop %v576
    %v581 = vmul.f32 1.0, %v580
    %v582 = vrcp.pop %v577
    %v583 = vmul.f32 1.0, %v582
    %v584 = vrcp.pop %v578
    %v585 = vmul.f32 1.0, %v584
    %v586 = vrcp.pop %v579
    %v587 = vmul.f32 1.0, %v586
    %v588 = vld [vmem:[%s3 + $0x20] sm:$0xff]
    %v589 = vld [vmem:[%s3 + $0x28] sm:$0xff]
    %v590 = vld [vmem:[%s3 + $0x30] sm:$0xff]
    %v591 = vld [vmem:[%s3 + $0x38] sm:$0xff]
    %593 = vset.pattern.permute.xlu0 0
    %594 = vperm.xlu0 %593, %v588
    %v595 = vpop.permute.xlu0 %594
    %598 = vset.pattern.permute.xlu0 0
    %599 = vperm.xlu0 %598, %v589
    %v600 = vpop.permute.xlu0 %599
    %603 = vset.pattern.permute.xlu0 0
    %604 = vperm.xlu0 %603, %v590
    %v605 = vpop.permute.xlu0 %604
    %608 = vset.pattern.permute.xlu0 0
    %609 = vperm.xlu0 %608, %v591
    %v610 = vpop.permute.xlu0 %609
    %v612 = vmul.f32 %v557, %v595
    %v613 = vmul.f32 %v559, %v600
    %v614 = vmul.f32 %v561, %v605
    %v615 = vmul.f32 %v563, %v610
    %v616 = vadd.f32 %v430, %v612
    %v617 = vadd.f32 %v435, %v613
    %v618 = vadd.f32 %v440, %v614
    %v619 = vadd.f32 %v445, %v615
    %v620 = vtanh.pop %v616
    %v621 = vtanh.pop %v617
    %v622 = vtanh.pop %v618
    %v623 = vtanh.pop %v619
    %v624 = vsub.f32 1.0, %v581
    %v625 = vsub.f32 1.0, %v583
    %v626 = vsub.f32 1.0, %v585
    %v627 = vsub.f32 1.0, %v587
    %v628 = vmul.f32 %v624, %v620
    %v629 = vmul.f32 %v625, %v621
    %v630 = vmul.f32 %v626, %v622
    %v631 = vmul.f32 %v627, %v623
    %632 = vst [vmem:[#allocation2] sm:$0xff] %v536
    %633 = vst [vmem:[#allocation2 + $0x8] sm:$0xff] %v537
    %634 = vst [vmem:[#allocation2 + $0x10] sm:$0xff] %v538
    %635 = vst [vmem:[#allocation2 + $0x18] sm:$0xff] %v539
    %636 = vst [vmem:[#allocation2 + $0x20] sm:$0xff] %v628
    %637 = vst [vmem:[#allocation2 + $0x28] sm:$0xff] %v629
    %638 = vst [vmem:[#allocation2 + $0x30] sm:$0xff] %v630
    %639 = vst [vmem:[#allocation2 + $0x38] sm:$0xff] %v631
    // Predicated region
    $region18: #{tpu_custom_call.1} parent=1 // pred_check
      _
    $region19: #{tpu_custom_call.1} parent=1 // pred_check_branch
      %641 = sbr.rel (0) target = $region21
    $region20: #{tpu_custom_call.1} parent=1 // pred_region
      %s643 = ssub.s32 1024, 1024
      %644 = vsyncadd [#allocation3], %s643
      %s645 = sshll.u32 [#allocation2], 4
      %s646 = int_to_ptr.vmem [resolvable:$true] %s645
      %651 = dma.vmem_to_hbm [thread:$0]  %s646, 1024, %s4, [#allocation3], 128, 128, 8
    $region21: #{tpu_custom_call.1} parent=1 // pred_fallthru
      _
    // Predicated region
    $region22: #{tpu_custom_call.1} parent=1 // pred_check
      _
    $region23: #{tpu_custom_call.1} parent=1 // pred_check_branch
      %653 = sbr.rel (0) target = $region25
    $region24: #{tpu_custom_call.1} parent=1 // pred_region
      %654 = dma.done [#allocation3], 1024
    $region25: #{tpu_custom_call.1} parent=1 // pred_fallthru
      _
    %655 = vsyncpa [#allocation3], 1

</llo_original>
